<compile_context>
chip_gen: v5e
topology: v5e:2x2
jax: 0.10.0
libtpu: 0.0.40
codegen_flags: <defaults>
</compile_context>

<pallas_src>
import jax
import jax.numpy as jnp
from jax.experimental import pallas as pl
from jax.experimental.pallas import tpu as pltpu

P_FEATURES = 2        # p in the reference module
LANE = 128            # TPU lane width
MAX_TILE_N = 8192     # lanes per block: big enough to hide per-step overhead,
                      # tiny vs VMEM (2*(2+1)*8192*4B ≈ 192 KiB double-buffered)


def _round_up(x, m):
    return (x + m - 1) // m * m


def linear_kernel(w_ref, b_ref, x_ref, o_ref):
    """w_ref: (p,) SMEM, b_ref: (1,) SMEM, x_ref: (p, TILE_N) VMEM, o_ref: (1, TILE_N) VMEM."""
    p = x_ref.shape[0]
    acc = x_ref[0:1, :] * w_ref[0]          # (1, TILE_N) * scalar  -> VPU
    for i in range(1, p):                   # static unroll (p == 2)
        acc = acc + x_ref[i:i + 1, :] * w_ref[i]
    o_ref[...] = (acc + b_ref[0]).astype(o_ref.dtype)


def regression_model_forward(x, weight, bias):
    """x: (N, p) f32; weight: (1, p) f32 (PyTorch nn.Linear layout); bias: (1,) f32 -> (N, 1)."""
    n, p = x.shape
    dtype = x.dtype

    # Lane-dense, feature-major layout; pad N up to a multiple of the tile width.
    n_pad = _round_up(n, LANE)
    tile_n = min(MAX_TILE_N, n_pad)
    n_pad = _round_up(n_pad, tile_n)
    x_t = jnp.zeros((p, n_pad), dtype).at[:, :n].set(x.T)

    w_vec = weight.reshape(p).astype(dtype)   # (p,) scalars for SMEM
    b_vec = bias.reshape(1).astype(dtype)     # (1,) scalar for SMEM

    grid = (n_pad // tile_n,)
    out = pl.pallas_call(
        linear_kernel,
        out_shape=jax.ShapeDtypeStruct((1, n_pad), dtype),
        grid=grid,
        in_specs=[
            pl.BlockSpec(memory_space=pltpu.MemorySpace.SMEM),   # weight (p,)
            pl.BlockSpec(memory_space=pltpu.MemorySpace.SMEM),   # bias (1,)
            pl.BlockSpec((p, tile_n), lambda i: (0, i)),          # x tile, lane-dense
        ],
        out_specs=pl.BlockSpec((1, tile_n), lambda i: (0, i)),    # lane-dense output
        compiler_params=pltpu.CompilerParams(
            dimension_semantics=("parallel",)),
        cost_estimate=pl.CostEstimate(
            flops=2 * n_pad * p,
            transcendentals=0,
            bytes_accessed=4 * (n_pad * p + n_pad + p + 1)),
    )(w_vec, b_vec, x_t)

    return out[0, :n].reshape(n, 1)


if __name__ == "__main__":
    key = jax.random.PRNGKey(0)
    kx, kw, kb = jax.random.split(key, 3)

    # Small demo batch; deliberately not a multiple of 128 to exercise the padding path.
    N = 1000
    x = jax.random.normal(kx, (N, P_FEATURES), dtype=jnp.float32)

    # Deterministic parameter init mimicking nn.Linear's U(-1/sqrt(p), 1/sqrt(p)).
    bound = 1.0 / (P_FEATURES ** 0.5)
    weight = jax.random.uniform(kw, (1, P_FEATURES), jnp.float32, -bound, bound)
    bias = jax.random.uniform(kb, (1,), jnp.float32, -bound, bound)

    out = regression_model_forward(x, weight, bias)
    out = jax.block_until_ready(out)

    # Reference check against plain JAX (same math as torch.nn.Linear).
    ref = x @ weight.T + bias
    assert out.shape == (N, 1)
    assert jnp.allclose(out, ref, atol=1e-5, rtol=1e-5)

    print("KERNEL_OK")
</pallas_src>

<mosaic_0001>
module attributes {stable_mosaic.version = 11 : i64} {
  func.func @linear_kernel(%arg0: i32, %arg1: memref<2xf32, #tpu.memory_space<smem>>, %arg2: memref<1xf32, #tpu.memory_space<smem>>, %arg3: memref<2x1024xf32, #tpu.memory_space<vmem>>, %arg4: memref<1x1024xf32, #tpu.memory_space<vmem>>) attributes {dimension_semantics = [#tpu.dimension_semantics<parallel>], iteration_bounds = array<i64: 1>, scalar_prefetch = 0 : i64, scratch_operands = 0 : i64, tpu.core_type = #tpu.core_type<tc>, window_params = [{transform_indices = @transform_0, window_bounds = array<i64: 2>}, {transform_indices = @transform_1, window_bounds = array<i64: 1>}, {transform_indices = @transform_2, window_bounds = array<i64: 2, 1024>}, {transform_indices = @transform_3, window_bounds = array<i64: 1, 1024>}]} {
    %c0 = arith.constant 0 : index
    %c0_0 = arith.constant 0 : index
    %0 = vector.load %arg3[%c0, %c0_0] : memref<2x1024xf32, #tpu.memory_space<vmem>>, vector<1x1024xf32>
    %c0_1 = arith.constant 0 : index
    %1 = memref.load %arg1[%c0_1] : memref<2xf32, #tpu.memory_space<smem>>
    %2 = vector.broadcast %1 : f32 to vector<1x1024xf32>
    %3 = arith.mulf %0, %2 : vector<1x1024xf32>
    %c1 = arith.constant 1 : index
    %c0_2 = arith.constant 0 : index
    %4 = vector.load %arg3[%c1, %c0_2] : memref<2x1024xf32, #tpu.memory_space<vmem>>, vector<1x1024xf32>
    %c1_3 = arith.constant 1 : index
    %5 = memref.load %arg1[%c1_3] : memref<2xf32, #tpu.memory_space<smem>>
    %6 = vector.broadcast %5 : f32 to vector<1x1024xf32>
    %7 = arith.mulf %4, %6 : vector<1x1024xf32>
    %8 = arith.addf %3, %7 : vector<1x1024xf32>
    %c0_4 = arith.constant 0 : index
    %9 = memref.load %arg2[%c0_4] : memref<1xf32, #tpu.memory_space<smem>>
    %10 = vector.broadcast %9 : f32 to vector<1x1024xf32>
    %11 = arith.addf %8, %10 : vector<1x1024xf32>
    %c0_5 = arith.constant 0 : index
    %c0_6 = arith.constant 0 : index
    %12 = vector.load %arg4[%c0_5, %c0_6] : memref<1x1024xf32, #tpu.memory_space<vmem>>, vector<1x1024xf32>
    tpu.vector_store %arg4[%c0_5, %c0_6], %11 {strides = array<i32>} : memref<1x1024xf32, #tpu.memory_space<vmem>>, vector<1x1024xf32>,
    return
  }
  func.func @transform_0(%arg0: i32) -> i32 {
    %c0_i32 = arith.constant 0 : i32
    %c0_i32_0 = arith.constant 0 : i32
    return %c0_i32 : i32
  }
  func.func @transform_1(%arg0: i32) -> i32 {
    %c0_i32 = arith.constant 0 : i32
    %c0_i32_0 = arith.constant 0 : i32
    return %c0_i32 : i32
  }
  func.func @transform_2(%arg0: i32) -> (i32, i32) {
    %c0_i32 = arith.constant 0 : i32
    %c0_i32_0 = arith.constant 0 : i32
    return %c0_i32, %arg0 : i32, i32
  }
  func.func @transform_3(%arg0: i32) -> (i32, i32) {
    %c0_i32 = arith.constant 0 : i32
    %c0_i32_0 = arith.constant 0 : i32
    return %c0_i32, %arg0 : i32, i32
  }
}

</mosaic_0001>

<llo_original>
// kernel: tpu_custom_call.1
$region0: #{tpu_custom_call.1}
  #allocation0 [shape = 'u32[]', space=smem, size = 0x4, offset = 0x4, fixed_abs, tag = 'smem constant byte address 0x4 - core index']
  #allocation1 [shape = 'u32[72,128]{1,0:T(1,128)}', space=vmem, size = 0x9000, scoped, tag = 'internal scratch']
  #allocation2 [shape = 'f32[1]{0:T(128)S(6)}', space=smem, size = 0x200, scoped, tag = 'scoped memory for tpu_custom_call.1']
  %s0 = inlined_call_operand.vmem [shape: f32[2], index: 0, kind: input, shape index: {}]
  %s1 = inlined_call_operand.<no memory space> [shape: f32[1], index: 1, kind: input, shape index: {}]
  %s2 = inlined_call_operand.hbm [shape: f32[2,1024], index: 2, kind: input, shape index: {}]
  %s3 = inlined_call_operand.hbm [shape: f32[1,1024], index: 3, kind: output, shape index: {}]
  %s4 = sld [smem:[#allocation0]]
  $region30: #{tpu_custom_call.1} parent=0
    _
  %s6 = ssub.s32 1, %s4
  %s7 = scalar_select 0, %s6, %s4
  %8 = sst [smem:[#allocation2]] %s1
  $region1: #{tpu_custom_call.1} parent=0
    #allocation3 [shape = 'u8[512]{0}', space=smem, size = 0x200, scoped, tag = 'input window, operand 0, single buffered']
    #allocation4 [shape = 's32[1]{0}', space=sflag, size = 0x4, scoped, tag = 'scoped memory for tpu_custom_call.1']
    #allocation5 [shape = 's32[1]{0}', space=sflag, size = 0x4, scoped, tag = 'scoped memory for tpu_custom_call.1']
    #allocation6 [shape = 's32[1]{0}', space=sflag, size = 0x4, scoped, tag = 'scoped memory for tpu_custom_call.1']
    #allocation7 [shape = 'u8[8192]{0}', space=vmem, size = 0x2000, scoped, tag = 'input window, operand 2, single buffered']
    #allocation8 [shape = 'u8[4096]{0}', space=vmem, size = 0x1000, scoped, tag = 'output window, operand 0, single buffered']
    %9 = vsyncpa [#allocation6], 0
    %10 = vsyncpa [#allocation4], 0
    %11 = vsyncpa [#allocation5], 0
    // Predicated region
    $region2: #{tpu_custom_call.1} parent=1 // pred_check
      _
    $region3: #{tpu_custom_call.1} parent=1 // pred_check_branch
      %13 = sbr.rel (0) target = $region5
    $region4: #{tpu_custom_call.1} parent=1 // pred_region
      %15 = vsyncadd [#allocation6], 0
      %s17 = sshll.u32 %s0, 4
      %s18 = int_to_ptr.vmem [resolvable:$true] %s17
      %20 = dma.vmem_to_smem %s18, 16, [#allocation3], [#allocation6]
    $region5: #{tpu_custom_call.1} parent=1 // pred_fallthru
      _
    // Predicated region
    $region6: #{tpu_custom_call.1} parent=1 // pred_check
      _
    $region7: #{tpu_custom_call.1} parent=1 // pred_check_branch
      %22 = sbr.rel (0) target = $region9
    $region8: #{tpu_custom_call.1} parent=1 // pred_region
      _
    $region9: #{tpu_custom_call.1} parent=1 // pred_fallthru
      _
    // Predicated region
    $region10: #{tpu_custom_call.1} parent=1 // pred_check
      _
    $region11: #{tpu_custom_call.1} parent=1 // pred_check_branch
      %24 = sbr.rel (0) target = $region13
    $region12: #{tpu_custom_call.1} parent=1 // pred_region
      %26 = vsyncadd [#allocation4], 0
      %s28 = sshll.u32 %s2, 4
      %s29 = int_to_ptr.hbm [resolvable:$true] %s28
      %s30 = sshll.u32 [#allocation7], 4
      %s31 = int_to_ptr.vmem [resolvable:$true] %s30
      %33 = dma.hbm_to_vmem [thread:$0]  %s29, 256, %s31, [#allocation4]
    $region13: #{tpu_custom_call.1} parent=1 // pred_fallthru
      _
    // Predicated region
    $region14: #{tpu_custom_call.1} parent=1 // pred_check
      _
    $region15: #{tpu_custom_call.1} parent=1 // pred_check_branch
      %35 = sbr.rel (0) target = $region17
    $region16: #{tpu_custom_call.1} parent=1 // pred_region
      %37 = dma.done [#allocation6], 16
    $region17: #{tpu_custom_call.1} parent=1 // pred_fallthru
      _
    // Predicated region
    $region18: #{tpu_custom_call.1} parent=1 // pred_check
      _
    $region19: #{tpu_custom_call.1} parent=1 // pred_check_branch
      %39 = sbr.rel (0) target = $region21
    $region20: #{tpu_custom_call.1} parent=1 // pred_region
      %41 = dma.done [#allocation4], 256
    $region21: #{tpu_custom_call.1} parent=1 // pred_fallthru
      _
    %42 = sfence
    %v43 = vld [vmem:[#allocation7] ss:$2 sm:$0xff]
    %s44 = sld [smem:[#allocation3]]
    %v45 = vstv %s44
    %v46 = vmul.f32 %v43, %v45
    %s47 = scalar_lea.vmem [#allocation7], 1
    %v48 = vld [vmem:[%s47] ss:$2 sm:$0xff]
    %s49 = sld [smem:[#allocation3 + $0x1]]
    %v50 = vstv %s49
    %v51 = vmul.f32 %v48, %v50
    %v52 = vadd.f32 %v46, %v51
    %s53 = sld [smem:[#allocation2]]
    %v54 = vstv %s53
    %v55 = vadd.f32 %v52, %v54
    %56 = vst [vmem:[#allocation8] sm:$0xff] %v55
    // Predicated region
    $region22: #{tpu_custom_call.1} parent=1 // pred_check
      _
    $region23: #{tpu_custom_call.1} parent=1 // pred_check_branch
      %58 = sbr.rel (0) target = $region25
    $region24: #{tpu_custom_call.1} parent=1 // pred_region
      %60 = vsyncadd [#allocation5], 0
      %s62 = sshll.u32 [#allocation8], 4
      %s63 = int_to_ptr.vmem [resolvable:$true] %s62
      %s64 = sshll.u32 %s3, 4
      %s65 = int_to_ptr.hbm [resolvable:$true] %s64
      %67 = dma.vmem_to_hbm [thread:$0]  %s63, 128, %s65, [#allocation5]
    $region25: #{tpu_custom_call.1} parent=1 // pred_fallthru
      _
    // Predicated region
    $region26: #{tpu_custom_call.1} parent=1 // pred_check
      _
    $region27: #{tpu_custom_call.1} parent=1 // pred_check_branch
      %69 = sbr.rel (0) target = $region29
    $region28: #{tpu_custom_call.1} parent=1 // pred_region
      %71 = dma.done [#allocation5], 128
    $region29: #{tpu_custom_call.1} parent=1 // pred_fallthru
      _
    %72 = vsyncpa [#allocation4], 1
    %73 = vsyncpa [#allocation5], 1
    %74 = vsyncpa [#allocation6], 1

</llo_original>
